<compile_context>
chip_gen: v6e
topology: v6e:2x2x1
jax: 0.10.0
libtpu: 0.0.40
codegen_flags: <defaults>
</compile_context>

<pallas_src>
import jax
import jax.numpy as jnp
from jax.experimental import pallas as pl
from jax.experimental.pallas import tpu as pltpu


def _leaky_relu(y, slope=0.1):
    return jnp.where(y > 0, y, slope * y)


def section_nn_kernel(x_ref, w1_ref, b1_ref, w2_ref, b2_ref, w3_ref, b3_ref,
                      o_ref):
    # layer 1: Linear(input_dim -> hidden1) + LeakyReLU(0.1)
    h = jnp.dot(x_ref[...], w1_ref[...], preferred_element_type=jnp.float32)
    h = _leaky_relu(h + b1_ref[...])

    # layer 2: Linear(hidden1 -> hidden2) + LeakyReLU(0.1)
    h = jnp.dot(h.astype(w2_ref.dtype), w2_ref[...],
                preferred_element_type=jnp.float32)
    h = _leaky_relu(h + b2_ref[...])

    # layer 3: Linear(hidden2 -> output_dim), no activation.
    y = jnp.dot(h.astype(w3_ref.dtype), w3_ref[...],
                preferred_element_type=jnp.float32)
    y = y + b3_ref[...]

    o_ref[...] = y.astype(o_ref.dtype)


def _round_up(n, m):
    return ((n + m - 1) // m) * m


def _choose_tb(batch, desired_tb):
    """Pick a batch tile: multiple of 8, at most the batch, and (when the
    batch allows) small enough that the grid has >= 2 steps so both v7x
    TensorCores get work."""
    tb = max(8, _round_up(min(desired_tb, batch), 8))
    if batch > 8 and pl.cdiv(batch, tb) < 2:
        tb = max(8, _round_up(pl.cdiv(batch, 2), 8))
    return tb


def section_nn_forward(x, params, *, tb=2048):
    """x: (B, input_dim) float32; params: dict of weights/biases.

    Batch is tiled by `tb` rows per grid step (partial last block handled by
    Pallas masking -- no pad copy). Weights stay VMEM-resident across the
    grid; the narrow (B, out_dim) output is written directly.
    """
    w1, b1, w2, b2, w3, b3 = (params["w1"], params["b1"], params["w2"],
                              params["b2"], params["w3"], params["b3"])
    B, in_dim = x.shape
    h1 = w1.shape[1]
    h2 = w2.shape[1]
    out_dim = w3.shape[1]

    tb = _choose_tb(B, tb)
    grid = (pl.cdiv(B, tb),)

    resident = lambda a: pl.BlockSpec(a.shape, lambda i: (0,) * a.ndim)

    flops = 2 * B * (in_dim * h1 + h1 * h2 + h2 * out_dim)
    weight_bytes = sum(int(a.size) * a.dtype.itemsize
                       for a in (w1, b1, w2, b2, w3, b3))
    bytes_accessed = (B * (in_dim + out_dim) * x.dtype.itemsize
                      + weight_bytes)

    out = pl.pallas_call(
        section_nn_kernel,
        out_shape=jax.ShapeDtypeStruct((B, out_dim), x.dtype),
        grid=grid,
        in_specs=[
            pl.BlockSpec((tb, in_dim), lambda i: (i, 0)),   # x tiles stream
            resident(w1), resident(b1),                     # weights stay put
            resident(w2), resident(b2),
            resident(w3), resident(b3),
        ],
        out_specs=pl.BlockSpec((tb, out_dim), lambda i: (i, 0)),
        compiler_params=pltpu.CompilerParams(
            dimension_semantics=("parallel",)),             # 2 TCs on v7x
        cost_estimate=pl.CostEstimate(flops=flops,
                                      transcendentals=0,
                                      bytes_accessed=bytes_accessed),
    )(x, w1, b1, w2, b2, w3, b3)

    return out


def init_params(key, input_dim, hidden1, hidden2, output_dim):
    """Deterministic init mimicking PyTorch nn.Linear (uniform +-1/sqrt(fan_in)).
    Weights stored as (in_features, out_features)."""
    keys = jax.random.split(key, 6)

    def linear(kw, kb, fan_in, fan_out):
        bound = 1.0 / jnp.sqrt(fan_in)
        w = jax.random.uniform(kw, (fan_in, fan_out), jnp.float32,
                               minval=-bound, maxval=bound)
        b = jax.random.uniform(kb, (1, fan_out), jnp.float32,
                               minval=-bound, maxval=bound)
        return w, b

    w1, b1 = linear(keys[0], keys[1], input_dim, hidden1)
    w2, b2 = linear(keys[2], keys[3], hidden1, hidden2)
    w3, b3 = linear(keys[4], keys[5], hidden2, output_dim)
    return dict(w1=w1, b1=b1, w2=w2, b2=b2, w3=w3, b3=b3)


def reference_forward(x, p):
    h = x @ p["w1"] + p["b1"]
    h = jnp.where(h > 0, h, 0.1 * h)
    h = h @ p["w2"] + p["b2"]
    h = jnp.where(h > 0, h, 0.1 * h)
    return h @ p["w3"] + p["b3"]


if __name__ == "__main__":
    # config: {'input_dim': 16, 'hidden1': 32, 'hidden2': 32, 'output_dim': 8}
    B, input_dim, hidden1, hidden2, output_dim = 256, 16, 32, 32, 8

    key = jax.random.PRNGKey(0)
    k_x, k_p = jax.random.split(key)
    x = jax.random.normal(k_x, (B, input_dim), dtype=jnp.float32)
    params = init_params(k_p, input_dim, hidden1, hidden2, output_dim)

    out = section_nn_forward(x, params)        # default large tb, capped to grid>=2
    out = jax.block_until_ready(out)

    ref = reference_forward(x, params)
    assert out.shape == (B, output_dim)
    assert jnp.allclose(out, ref, atol=2e-5, rtol=1e-5), (
        float(jnp.max(jnp.abs(out - ref))))

    # Also exercise a non-divisible batch to check the masked partial block.
    x2 = x[:37]
    out2 = jax.block_until_ready(section_nn_forward(x2, params))
    ref2 = reference_forward(x2, params)
    assert out2.shape == (37, output_dim)
    assert jnp.allclose(out2, ref2, atol=2e-5, rtol=1e-5)

    # And a small explicit-tile run on the same data.
    out3 = jax.block_until_ready(section_nn_forward(x, params, tb=64))
    assert jnp.allclose(out3, ref, atol=2e-5, rtol=1e-5)

    print("KERNEL_OK")
</pallas_src>

<mosaic_0001>
module attributes {stable_mosaic.version = 11 : i64} {
  func.func @section_nn_kernel(%arg0: i32, %arg1: memref<128x16xf32, #tpu.memory_space<vmem>>, %arg2: memref<16x32xf32, #tpu.memory_space<vmem>>, %arg3: memref<1x32xf32, #tpu.memory_space<vmem>>, %arg4: memref<32x32xf32, #tpu.memory_space<vmem>>, %arg5: memref<1x32xf32, #tpu.memory_space<vmem>>, %arg6: memref<32x8xf32, #tpu.memory_space<vmem>>, %arg7: memref<1x8xf32, #tpu.memory_space<vmem>>, %arg8: memref<128x8xf32, #tpu.memory_space<vmem>>) attributes {dimension_semantics = [#tpu.dimension_semantics<parallel>], iteration_bounds = array<i64: 2>, scalar_prefetch = 0 : i64, scratch_operands = 0 : i64, tpu.core_type = #tpu.core_type<tc>, window_params = [{transform_indices = @transform_0, window_bounds = array<i64: 128, 16>}, {pipeline_mode = #tpu.pipeline_mode<synchronous>, transform_indices = @transform_1, window_bounds = array<i64: 16, 32>}, {pipeline_mode = #tpu.pipeline_mode<synchronous>, transform_indices = @transform_2, window_bounds = array<i64: 1, 32>}, {pipeline_mode = #tpu.pipeline_mode<synchronous>, transform_indices = @transform_3, window_bounds = array<i64: 32, 32>}, {pipeline_mode = #tpu.pipeline_mode<synchronous>, transform_indices = @transform_4, window_bounds = array<i64: 1, 32>}, {pipeline_mode = #tpu.pipeline_mode<synchronous>, transform_indices = @transform_5, window_bounds = array<i64: 32, 8>}, {pipeline_mode = #tpu.pipeline_mode<synchronous>, transform_indices = @transform_6, window_bounds = array<i64: 1, 8>}, {transform_indices = @transform_7, window_bounds = array<i64: 128, 8>}]} {
    %c0 = arith.constant 0 : index
    %c0_0 = arith.constant 0 : index
    %0 = vector.load %arg1[%c0, %c0_0] : memref<128x16xf32, #tpu.memory_space<vmem>>, vector<128x16xf32>
    %c0_1 = arith.constant 0 : index
    %c0_2 = arith.constant 0 : index
    %1 = vector.load %arg2[%c0_1, %c0_2] : memref<16x32xf32, #tpu.memory_space<vmem>>, vector<16x32xf32>
    %cst = arith.constant dense<0.000000e+00> : vector<128x32xf32>
    %2 = tpu.matmul %0, %1, %cst {dimension_numbers = #tpu.dot_dimension_numbers<[1], [0], [0], [1], [0, 0, 1, 1], [], []>} : vector<128x16xf32>, vector<16x32xf32>, vector<128x32xf32> -> vector<128x32xf32>
    %c0_3 = arith.constant 0 : index
    %c0_4 = arith.constant 0 : index
    %3 = vector.load %arg3[%c0_3, %c0_4] : memref<1x32xf32, #tpu.memory_space<vmem>>, vector<1x32xf32>
    %4 = vector.broadcast %3 : vector<1x32xf32> to vector<128x32xf32>
    %5 = arith.addf %2, %4 : vector<128x32xf32>
    %cst_5 = arith.constant 0.000000e+00 : f32
    %6 = vector.broadcast %cst_5 : f32 to vector<128x32xf32>
    %7 = arith.cmpf ogt, %5, %6 : vector<128x32xf32>
    %cst_6 = arith.constant 1.000000e-01 : f32
    %8 = vector.broadcast %cst_6 : f32 to vector<128x32xf32>
    %9 = arith.mulf %8, %5 : vector<128x32xf32>
    %10 = arith.select %7, %5, %9 : vector<128x32xi1>, vector<128x32xf32>
    %c0_7 = arith.constant 0 : index
    %c0_8 = arith.constant 0 : index
    %11 = vector.load %arg4[%c0_7, %c0_8] : memref<32x32xf32, #tpu.memory_space<vmem>>, vector<32x32xf32>
    %cst_9 = arith.constant dense<0.000000e+00> : vector<128x32xf32>
    %12 = tpu.matmul %10, %11, %cst_9 {dimension_numbers = #tpu.dot_dimension_numbers<[1], [0], [0], [1], [0, 0, 1, 1], [], []>} : vector<128x32xf32>, vector<32x32xf32>, vector<128x32xf32> -> vector<128x32xf32>
    %c0_10 = arith.constant 0 : index
    %c0_11 = arith.constant 0 : index
    %13 = vector.load %arg5[%c0_10, %c0_11] : memref<1x32xf32, #tpu.memory_space<vmem>>, vector<1x32xf32>
    %14 = vector.broadcast %13 : vector<1x32xf32> to vector<128x32xf32>
    %15 = arith.addf %12, %14 : vector<128x32xf32>
    %cst_12 = arith.constant 0.000000e+00 : f32
    %16 = vector.broadcast %cst_12 : f32 to vector<128x32xf32>
    %17 = arith.cmpf ogt, %15, %16 : vector<128x32xf32>
    %cst_13 = arith.constant 1.000000e-01 : f32
    %18 = vector.broadcast %cst_13 : f32 to vector<128x32xf32>
    %19 = arith.mulf %18, %15 : vector<128x32xf32>
    %20 = arith.select %17, %15, %19 : vector<128x32xi1>, vector<128x32xf32>
    %c0_14 = arith.constant 0 : index
    %c0_15 = arith.constant 0 : index
    %21 = vector.load %arg6[%c0_14, %c0_15] : memref<32x8xf32, #tpu.memory_space<vmem>>, vector<32x8xf32>
    %cst_16 = arith.constant dense<0.000000e+00> : vector<128x8xf32>
    %22 = tpu.matmul %20, %21, %cst_16 {dimension_numbers = #tpu.dot_dimension_numbers<[1], [0], [0], [1], [0, 0, 1, 1], [], []>} : vector<128x32xf32>, vector<32x8xf32>, vector<128x8xf32> -> vector<128x8xf32>
    %c0_17 = arith.constant 0 : index
    %c0_18 = arith.constant 0 : index
    %23 = vector.load %arg7[%c0_17, %c0_18] : memref<1x8xf32, #tpu.memory_space<vmem>>, vector<1x8xf32>
    %24 = vector.broadcast %23 : vector<1x8xf32> to vector<128x8xf32>
    %25 = arith.addf %22, %24 : vector<128x8xf32>
    %c0_19 = arith.constant 0 : index
    %c0_20 = arith.constant 0 : index
    %26 = vector.load %arg8[%c0_19, %c0_20] : memref<128x8xf32, #tpu.memory_space<vmem>>, vector<128x8xf32>
    tpu.vector_store %arg8[%c0_19, %c0_20], %25 {strides = array<i32>} : memref<128x8xf32, #tpu.memory_space<vmem>>, vector<128x8xf32>,
    return
  }
  func.func @transform_0(%arg0: i32) -> (i32, i32) {
    %c0_i32 = arith.constant 0 : i32
    %c0_i32_0 = arith.constant 0 : i32
    return %arg0, %c0_i32 : i32, i32
  }
  func.func @transform_1(%arg0: i32) -> (i32, i32) {
    %c0_i32 = arith.constant 0 : i32
    %c0_i32_0 = arith.constant 0 : i32
    %c0_i32_1 = arith.constant 0 : i32
    return %c0_i32, %c0_i32_0 : i32, i32
  }
  func.func @transform_2(%arg0: i32) -> (i32, i32) {
    %c0_i32 = arith.constant 0 : i32
    %c0_i32_0 = arith.constant 0 : i32
    %c0_i32_1 = arith.constant 0 : i32
    return %c0_i32, %c0_i32_0 : i32, i32
  }
  func.func @transform_3(%arg0: i32) -> (i32, i32) {
    %c0_i32 = arith.constant 0 : i32
    %c0_i32_0 = arith.constant 0 : i32
    %c0_i32_1 = arith.constant 0 : i32
    return %c0_i32, %c0_i32_0 : i32, i32
  }
  func.func @transform_4(%arg0: i32) -> (i32, i32) {
    %c0_i32 = arith.constant 0 : i32
    %c0_i32_0 = arith.constant 0 : i32
    %c0_i32_1 = arith.constant 0 : i32
    return %c0_i32, %c0_i32_0 : i32, i32
  }
  func.func @transform_5(%arg0: i32) -> (i32, i32) {
    %c0_i32 = arith.constant 0 : i32
    %c0_i32_0 = arith.constant 0 : i32
    %c0_i32_1 = arith.constant 0 : i32
    return %c0_i32, %c0_i32_0 : i32, i32
  }
  func.func @transform_6(%arg0: i32) -> (i32, i32) {
    %c0_i32 = arith.constant 0 : i32
    %c0_i32_0 = arith.constant 0 : i32
    %c0_i32_1 = arith.constant 0 : i32
    return %c0_i32, %c0_i32_0 : i32, i32
  }
  func.func @transform_7(%arg0: i32) -> (i32, i32) {
    %c0_i32 = arith.constant 0 : i32
    %c0_i32_0 = arith.constant 0 : i32
    return %arg0, %c0_i32 : i32, i32
  }
}

</mosaic_0001>

<llo_original>
// kernel: tpu_custom_call.1
$region0: #{tpu_custom_call.1}
  #allocation0 [shape = 'u32[]', space=smem, size = 0x4, offset = 0x4, fixed_abs, tag = 'smem constant byte address 0x4 - core index']
  #allocation1 [shape = 'u32[144,128]{1,0:T(1,128)}', space=vmem, size = 0x12000, scoped, tag = 'internal scratch']
  %s0 = inlined_call_operand.vmem [shape: f32[256,16], index: 0, kind: input, shape index: {}]
  %s1 = inlined_call_operand.vmem [shape: f32[16,32], index: 1, kind: input, shape index: {}]
  %s2 = inlined_call_operand.vmem [shape: f32[1,32], index: 2, kind: input, shape index: {}]
  %s3 = inlined_call_operand.vmem [shape: f32[32,32], index: 3, kind: input, shape index: {}]
  %s4 = inlined_call_operand.vmem [shape: f32[1,32], index: 4, kind: input, shape index: {}]
  %s5 = inlined_call_operand.vmem [shape: f32[32,8], index: 5, kind: input, shape index: {}]
  %s6 = inlined_call_operand.vmem [shape: f32[1,8], index: 6, kind: input, shape index: {}]
  %s7 = inlined_call_operand.vmem [shape: f32[256,8], index: 7, kind: output, shape index: {}]
  %s8 = sld [smem:[#allocation0]]
  $region61: #{tpu_custom_call.1} parent=0
    _
  %s10 = ssub.s32 1, %s8
  %s11 = scalar_select 0, %s10, %s8
  loop: start=0, step=1, limit=4
  $region2: #{tpu_custom_call.1} parent=0 // loop_pre_header
    _
  $region3: #{tpu_custom_call.1} parent=0 // loop_header
    %s13 = sphi 0, %s17
    %p14 = scmp.ge.s32.totalorder %s13, 4
    %s23 = sphi 0, %s25
    %s26 = sphi 0, %s23
    %s27 = sphi 0, %s26
    %s43 = sphi 0, %s27
    %s47 = sphi 0, %s47
    %s49 = sphi 0, %s47
    %s50 = sphi 0, %s49
    %s64 = sphi 0, %s50
    %s68 = sphi 0, %s68
    %s70 = sphi 0, %s68
    %s71 = sphi 0, %s70
    %s85 = sphi 0, %s71
    %s89 = sphi 0, %s89
    %s91 = sphi 0, %s89
    %s92 = sphi 0, %s91
    %s106 = sphi 0, %s92
    %s110 = sphi 0, %s110
    %s112 = sphi 0, %s110
    %s113 = sphi 0, %s112
    %s127 = sphi 0, %s113
    %s131 = sphi 0, %s131
    %s133 = sphi 0, %s131
    %s134 = sphi 0, %s133
    %s148 = sphi 0, %s134
    %s152 = sphi 0, %s152
    %s154 = sphi 0, %s152
    %s155 = sphi 0, %s154
    %s169 = sphi 0, %s155
    %s175 = sphi 0, %s177
    %s178 = sphi 0, %s175
    %s179 = sphi 0, %s178
    %s195 = sphi 0, %s179
  $region4: #{tpu_custom_call.1} parent=0 // loop_header_branch
    %16 = sbr.rel (%p14) target = $region8
  $region5: #{tpu_custom_call.1} parent=0 // loop_body
    %s18 = ssub.s32 %s13, 1
    %s19 = ssub.s32 %s13, 2
    %s20 = sadd.s32 %s13, 1
    %s21 = ssub.s32 %s13, %s20
    %p22 = scmp.eq.s32.totalorder %s21, 0
    %s24 = sadd.s32 %s23, 1
    %s25 = scalar_select %p22, %s23, %s24
    %p28 = pneg %p22
    %p29 = scmp.eq.s32.totalorder %s13, 1
    %p30 = por %p28, %p29
    %p31 = scmp.ne.s32.totalorder %s23, %s26
    %p32 = scmp.eq.s32.totalorder %s13, 0
    %p33 = por %p31, %p32
    %p34 = scmp.ne.s32.totalorder %s23, %s26
    %p35 = scmp.eq.s32.totalorder %s18, 1
    %p36 = por %p34, %p35
    %p37 = scmp.ne.s32.totalorder %s26, %s27
    %p38 = scmp.eq.s32.totalorder %s18, 0
    %p39 = por %p37, %p38
    %p40 = scmp.ne.s32.totalorder %s26, %s27
    %p41 = scmp.eq.s32.totalorder %s19, 1
    %p42 = por %p40, %p41
    %p44 = scmp.ne.s32.totalorder %s27, %s43
    %p45 = scmp.eq.s32.totalorder %s19, 0
    %p46 = por %p44, %p45
    %s48 = sadd.s32 %s47, 1
    %p51 = scmp.eq.s32.totalorder %s13, 1
    %p52 = scmp.ne.s32.totalorder %s47, %s49
    %p53 = scmp.eq.s32.totalorder %s13, 0
    %p54 = por %p52, %p53
    %p55 = scmp.ne.s32.totalorder %s47, %s49
    %p56 = scmp.eq.s32.totalorder %s18, 1
    %p57 = por %p55, %p56
    %p58 = scmp.ne.s32.totalorder %s49, %s50
    %p59 = scmp.eq.s32.totalorder %s18, 0
    %p60 = por %p58, %p59
    %p61 = scmp.ne.s32.totalorder %s49, %s50
    %p62 = scmp.eq.s32.totalorder %s19, 1
    %p63 = por %p61, %p62
    %p65 = scmp.ne.s32.totalorder %s50, %s64
    %p66 = scmp.eq.s32.totalorder %s19, 0
    %p67 = por %p65, %p66
    %s69 = sadd.s32 %s68, 1
    %p72 = scmp.eq.s32.totalorder %s13, 1
    %p73 = scmp.ne.s32.totalorder %s68, %s70
    %p74 = scmp.eq.s32.totalorder %s13, 0
    %p75 = por %p73, %p74
    %p76 = scmp.ne.s32.totalorder %s68, %s70
    %p77 = scmp.eq.s32.totalorder %s18, 1
    %p78 = por %p76, %p77
    %p79 = scmp.ne.s32.totalorder %s70, %s71
    %p80 = scmp.eq.s32.totalorder %s18, 0
    %p81 = por %p79, %p80
    %p82 = scmp.ne.s32.totalorder %s70, %s71
    %p83 = scmp.eq.s32.totalorder %s19, 1
    %p84 = por %p82, %p83
    %p86 = scmp.ne.s32.totalorder %s71, %s85
    %p87 = scmp.eq.s32.totalorder %s19, 0
    %p88 = por %p86, %p87
    %s90 = sadd.s32 %s89, 1
    %p93 = scmp.eq.s32.totalorder %s13, 1
    %p94 = scmp.ne.s32.totalorder %s89, %s91
    %p95 = scmp.eq.s32.totalorder %s13, 0
    %p96 = por %p94, %p95
    %p97 = scmp.ne.s32.totalorder %s89, %s91
    %p98 = scmp.eq.s32.totalorder %s18, 1
    %p99 = por %p97, %p98
    %p100 = scmp.ne.s32.totalorder %s91, %s92
    %p101 = scmp.eq.s32.totalorder %s18, 0
    %p102 = por %p100, %p101
    %p103 = scmp.ne.s32.totalorder %s91, %s92
    %p104 = scmp.eq.s32.totalorder %s19, 1
    %p105 = por %p103, %p104
    %p107 = scmp.ne.s32.totalorder %s92, %s106
    %p108 = scmp.eq.s32.totalorder %s19, 0
    %p109 = por %p107, %p108
    %s111 = sadd.s32 %s110, 1
    %p114 = scmp.eq.s32.totalorder %s13, 1
    %p115 = scmp.ne.s32.totalorder %s110, %s112
    %p116 = scmp.eq.s32.totalorder %s13, 0
    %p117 = por %p115, %p116
    %p118 = scmp.ne.s32.totalorder %s110, %s112
    %p119 = scmp.eq.s32.totalorder %s18, 1
    %p120 = por %p118, %p119
    %p121 = scmp.ne.s32.totalorder %s112, %s113
    %p122 = scmp.eq.s32.totalorder %s18, 0
    %p123 = por %p121, %p122
    %p124 = scmp.ne.s32.totalorder %s112, %s113
    %p125 = scmp.eq.s32.totalorder %s19, 1
    %p126 = por %p124, %p125
    %p128 = scmp.ne.s32.totalorder %s113, %s127
    %p129 = scmp.eq.s32.totalorder %s19, 0
    %p130 = por %p128, %p129
    %s132 = sadd.s32 %s131, 1
    %p135 = scmp.eq.s32.totalorder %s13, 1
    %p136 = scmp.ne.s32.totalorder %s131, %s133
    %p137 = scmp.eq.s32.totalorder %s13, 0
    %p138 = por %p136, %p137
    %p139 = scmp.ne.s32.totalorder %s131, %s133
    %p140 = scmp.eq.s32.totalorder %s18, 1
    %p141 = por %p139, %p140
    %p142 = scmp.ne.s32.totalorder %s133, %s134
    %p143 = scmp.eq.s32.totalorder %s18, 0
    %p144 = por %p142, %p143
    %p145 = scmp.ne.s32.totalorder %s133, %s134
    %p146 = scmp.eq.s32.totalorder %s19, 1
    %p147 = por %p145, %p146
    %p149 = scmp.ne.s32.totalorder %s134, %s148
    %p150 = scmp.eq.s32.totalorder %s19, 0
    %p151 = por %p149, %p150
    %s153 = sadd.s32 %s152, 1
    %p156 = scmp.eq.s32.totalorder %s13, 1
    %p157 = scmp.ne.s32.totalorder %s152, %s154
    %p158 = scmp.eq.s32.totalorder %s13, 0
    %p159 = por %p157, %p158
    %p160 = scmp.ne.s32.totalorder %s152, %s154
    %p161 = scmp.eq.s32.totalorder %s18, 1
    %p162 = por %p160, %p161
    %p163 = scmp.ne.s32.totalorder %s154, %s155
    %p164 = scmp.eq.s32.totalorder %s18, 0
    %p165 = por %p163, %p164
    %p166 = scmp.ne.s32.totalorder %s154, %s155
    %p167 = scmp.eq.s32.totalorder %s19, 1
    %p168 = por %p166, %p167
    %p170 = scmp.ne.s32.totalorder %s155, %s169
    %p171 = scmp.eq.s32.totalorder %s19, 0
    %p172 = por %p170, %p171
    %s173 = ssub.s32 %s13, %s20
    %p174 = scmp.eq.s32.totalorder %s173, 0
    %s176 = sadd.s32 %s175, 1
    %s177 = scalar_select %p174, %s175, %s176
    %p180 = pneg %p174
    %p181 = scmp.eq.s32.totalorder %s13, 1
    %p182 = por %p180, %p181
    %p183 = scmp.ne.s32.totalorder %s175, %s178
    %p184 = scmp.eq.s32.totalorder %s13, 0
    %p185 = por %p183, %p184
    %p186 = scmp.ne.s32.totalorder %s175, %s178
    %p187 = scmp.eq.s32.totalorder %s18, 1
    %p188 = por %p186, %p187
    %p189 = scmp.ne.s32.totalorder %s178, %s179
    %p190 = scmp.eq.s32.totalorder %s18, 0
    %p191 = por %p189, %p190
    %p192 = scmp.ne.s32.totalorder %s178, %s179
    %p193 = scmp.eq.s32.totalorder %s19, 1
    %p194 = por %p192, %p193
    %p196 = scmp.ne.s32.totalorder %s179, %s195
    %p197 = scmp.eq.s32.totalorder %s19, 0
    %p198 = por %p196, %p197
    %p199 = scmp.le.s32.totalorder 1, %s13
    %p200 = scmp.lt.s32.totalorder %s13, 3
    %p201 = pnand %p199, %p200
    %p202 = pneg %p201
    // Predicated region
    $region9: #{tpu_custom_call.1} parent=5 // pred_check
      _
    $region10: #{tpu_custom_call.1} parent=5 // pred_check_branch
      %204 = sbr.rel (%p201) target = $region12
    $region11: #{tpu_custom_call.1} parent=5 // pred_region
      %s205 = ssub.s32 %s13, 1
      // Predicated region
      $region13: #{tpu_custom_call.1} parent=11 // pred_check
        %p206 = pneg %p60
      $region14: #{tpu_custom_call.1} parent=11 // pred_check_branch
        %208 = sbr.rel (%p206) target = $region16
      $region15: #{tpu_custom_call.1} parent=11 // pred_region
        _
      $region16: #{tpu_custom_call.1} parent=11 // pred_fallthru
        _
      // Predicated region
      $region17: #{tpu_custom_call.1} parent=11 // pred_check
        %p209 = pneg %p81
      $region18: #{tpu_custom_call.1} parent=11 // pred_check_branch
        %211 = sbr.rel (%p209) target = $region20
      $region19: #{tpu_custom_call.1} parent=11 // pred_region
        _
      $region20: #{tpu_custom_call.1} parent=11 // pred_fallthru
        _
      // Predicated region
      $region21: #{tpu_custom_call.1} parent=11 // pred_check
        %p212 = pneg %p102
      $region22: #{tpu_custom_call.1} parent=11 // pred_check_branch
        %214 = sbr.rel (%p212) target = $region24
      $region23: #{tpu_custom_call.1} parent=11 // pred_region
        _
      $region24: #{tpu_custom_call.1} parent=11 // pred_fallthru
        _
      // Predicated region
      $region25: #{tpu_custom_call.1} parent=11 // pred_check
        %p215 = pneg %p123
      $region26: #{tpu_custom_call.1} parent=11 // pred_check_branch
        %217 = sbr.rel (%p215) target = $region28
      $region27: #{tpu_custom_call.1} parent=11 // pred_region
        _
      $region28: #{tpu_custom_call.1} parent=11 // pred_fallthru
        _
      // Predicated region
      $region29: #{tpu_custom_call.1} parent=11 // pred_check
        %p218 = pneg %p144
      $region30: #{tpu_custom_call.1} parent=11 // pred_check_branch
        %220 = sbr.rel (%p218) target = $region32
      $region31: #{tpu_custom_call.1} parent=11 // pred_region
        _
      $region32: #{tpu_custom_call.1} parent=11 // pred_fallthru
        _
      // Predicated region
      $region33: #{tpu_custom_call.1} parent=11 // pred_check
        %p221 = pneg %p165
      $region34: #{tpu_custom_call.1} parent=11 // pred_check_branch
        %223 = sbr.rel (%p221) target = $region36
      $region35: #{tpu_custom_call.1} parent=11 // pred_region
        _
      $region36: #{tpu_custom_call.1} parent=11 // pred_fallthru
        _
    $region12: #{tpu_custom_call.1} parent=5 // pred_fallthru
      _
    %p224 = scmp.lt.s32.totalorder %s13, 2
    // Predicated region
    $region37: #{tpu_custom_call.1} parent=5 // pred_check
      %p225 = pneg %p224
    $region38: #{tpu_custom_call.1} parent=5 // pred_check_branch
      %227 = sbr.rel (%p225) target = $region40
    $region39: #{tpu_custom_call.1} parent=5 // pred_region
      // Predicated region
      $region41: #{tpu_custom_call.1} parent=39 // pred_check
        %p228 = pneg %p33
      $region42: #{tpu_custom_call.1} parent=39 // pred_check_branch
        %230 = sbr.rel (%p228) target = $region44
      $region43: #{tpu_custom_call.1} parent=39 // pred_region
        %s231 = smul.u32 16, %s13
        %p232 = scmp.lt.s32.totalorder %s231, 31
        %s233 = scalar_select %p232, %s231, 31
        %s234 = smul.addr %s233, 8
        %s235 = scalar_lea.vmem %s0, %s234
        %s236 = smul.u32 16, %s13
      $region44: #{tpu_custom_call.1} parent=39 // pred_fallthru
        _
    $region40: #{tpu_custom_call.1} parent=5 // pred_fallthru
      _
    %p237 = scmp.le.s32.totalorder 1, %s13
    %p238 = scmp.lt.s32.totalorder %s13, 3
    %p239 = pnand %p237, %p238
    %p240 = pneg %p239
    // Predicated region
    $region45: #{tpu_custom_call.1} parent=5 // pred_check
      _
    $region46: #{tpu_custom_call.1} parent=5 // pred_check_branch
      %242 = sbr.rel (%p239) target = $region48
    $region47: #{tpu_custom_call.1} parent=5 // pred_region
      %s243 = ssub.s32 %s13, 1
      %s244 = smul.u32 16, %s18
      %p245 = scmp.lt.s32.totalorder %s244, 31
      %s246 = scalar_select %p245, %s244, 31
      %s247 = smul.addr %s246, 8
      %s248 = scalar_lea.vmem %s0, %s247
      %p249 = pneg %p39
      %p250 = pneg %p36
      %p251 = pneg %p60
      %p252 = pneg %p57
      %p253 = pneg %p81
      %p254 = pneg %p78
      %p255 = pneg %p102
      %p256 = pneg %p99
      %p257 = pneg %p123
      %p258 = pneg %p120
      %p259 = pneg %p144
      %p260 = pneg %p141
      %p261 = pneg %p165
      %p262 = pneg %p162
      %p263 = pneg %p191
      %p264 = pneg %p188
      %s265 = smul.u32 16, %s18
      %p266 = scmp.lt.s32.totalorder %s265, 31
      %s267 = scalar_select %p266, %s265, 31
      %s268 = smul.addr %s267, 8
      %s269 = scalar_lea.vmem %s7, %s268
      %s270 = smul.u32 16, %s18
      %p271 = scmp.lt.s32.totalorder %s270, 31
      %s272 = scalar_select %p271, %s270, 31
      %s273 = smul.addr %s272, 8
      %s274 = scalar_lea.vmem %s0, %s273
      %s275 = smul.u32 16, %s18
      %s276 = smul.u32 16, %s18
      %p277 = scmp.lt.s32.totalorder %s276, 31
      %s278 = scalar_select %p277, %s276, 31
      %s279 = smul.addr %s278, 8
      %s280 = scalar_lea.vmem %s7, %s279
      %s281 = smul.u32 16, %s18
      %v282 = vld [vmem:[%s274] sm:$0xff]
      %v283 = vld [vmem:[%s274 + $0x8] sm:$0xff]
      %v284 = vld [vmem:[%s274 + $0x10] sm:$0xff]
      %v285 = vld [vmem:[%s274 + $0x18] sm:$0xff]
      %v286 = vld [vmem:[%s274 + $0x20] sm:$0xff]
      %v287 = vld [vmem:[%s274 + $0x28] sm:$0xff]
      %v288 = vld [vmem:[%s274 + $0x30] sm:$0xff]
      %v289 = vld [vmem:[%s274 + $0x38] sm:$0xff]
      %v290 = vld [vmem:[%s274 + $0x40] sm:$0xff]
      %v291 = vld [vmem:[%s274 + $0x48] sm:$0xff]
      %v292 = vld [vmem:[%s274 + $0x50] sm:$0xff]
      %v293 = vld [vmem:[%s274 + $0x58] sm:$0xff]
      %v294 = vld [vmem:[%s274 + $0x60] sm:$0xff]
      %v295 = vld [vmem:[%s274 + $0x68] sm:$0xff]
      %v296 = vld [vmem:[%s274 + $0x70] sm:$0xff]
      %v297 = vld [vmem:[%s274 + $0x78] sm:$0xff]
      %v298 = vld [vmem:[%s1] sm:$0xff]
      %v299 = vld [vmem:[%s1 + $0x8] sm:$0xff]
      %v300 = vld [vmem:[%s2] sm:$0x1]
      %v302 = vlaneseq
      %v303 = vshrl.u32 %v302, 7
      %v304 = vsub.s32 0, %v303
      %v305 = vrot.slane %v300, %v304
      %vm307 = vcmask 130048
      %v309 = vsel %vm307, %v282, 0
      %v312 = vsel %vm307, %v283, 0
      %v315 = vsel %vm307, %v284, 0
      %v318 = vsel %vm307, %v285, 0
      %v321 = vsel %vm307, %v286, 0
      %v324 = vsel %vm307, %v287, 0
      %v327 = vsel %vm307, %v288, 0
      %v330 = vsel %vm307, %v289, 0
      %v333 = vsel %vm307, %v290, 0
      %v336 = vsel %vm307, %v291, 0
      %v339 = vsel %vm307, %v292, 0
      %v342 = vsel %vm307, %v293, 0
      %v345 = vsel %vm307, %v294, 0
      %v348 = vsel %vm307, %v295, 0
      %v351 = vsel %vm307, %v296, 0
      %v354 = vsel %vm307, %v297, 0
      %356 = vmatprep.subr.mxu0 0.0
      %357 = vmatpush1.msra.mxu0 0.0
      %358 = vmatprep.subr.mxu0 0.0
      %359 = vmatpush1.msra.mxu0 0.0
      %360 = vmatprep.subr.mxu0 0.0
      %361 = vmatpush1.msra.mxu0 0.0
      %362 = vmatprep.subr.mxu0 0.0
      %363 = vmatpush1.msra.mxu0 0.0
      %364 = vmatprep.subr.mxu0 0.0
      %365 = vmatpush1.msra.mxu0 0.0
      %366 = vmatprep.subr.mxu0 0.0
      %367 = vmatpush1.msra.mxu0 0.0
      %368 = vmatprep.subr.mxu0 0.0
      %369 = vmatpush1.msra.mxu0 0.0
      %370 = vmatprep.subr.mxu0 0.0
      %371 = vmatpush1.msra.mxu0 0.0
      %372 = vmatprep.subr.mxu0 0.0
      %373 = vmatpush1.msra.mxu0 0.0
      %374 = vmatprep.subr.mxu0 0.0
      %375 = vmatpush1.msra.mxu0 0.0
      %376 = vmatprep.subr.mxu0 0.0
      %377 = vmatpush1.msra.mxu0 0.0
      %378 = vmatprep.subr.mxu0 0.0
      %379 = vmatpush1.msra.mxu0 0.0
      %380 = vmatprep.subr.mxu0 0.0
      %381 = vmatpush1.msra.mxu0 0.0
      %382 = vmatprep.subr.mxu0 0.0
      %383 = vmatpush1.msra.mxu0 0.0
      %384 = vmatprep.subr.mxu0 0.0
      %385 = vmatpush1.msra.mxu0 %v299
      %386 = vmatprep.subr.mxu0 0.0
      %387 = vmatpush1.msra.mxu0 %v298
      %388 = vmatprep.subr.mxu0 0.0
      %389 = vmatpush2.msra.mxu0 0.0
      %390 = vmatprep.subr.mxu0 0.0
      %391 = vmatpush2.msra.mxu0 0.0
      %392 = vmatprep.subr.mxu0 0.0
      %393 = vmatpush2.msra.mxu0 0.0
      %394 = vmatprep.subr.mxu0 0.0
      %395 = vmatpush2.msra.mxu0 0.0
      %396 = vmatprep.subr.mxu0 0.0
      %397 = vmatpush2.msra.mxu0 0.0
      %398 = vmatprep.subr.mxu0 0.0
      %399 = vmatpush2.msra.mxu0 0.0
      %400 = vmatprep.subr.mxu0 0.0
      %401 = vmatpush2.msra.mxu0 0.0
      %402 = vmatprep.subr.mxu0 0.0
      %403 = vmatpush2.msra.mxu0 0.0
      %404 = vmatprep.subr.mxu0 0.0
      %405 = vmatpush2.msra.mxu0 0.0
      %406 = vmatprep.subr.mxu0 0.0
      %407 = vmatpush2.msra.mxu0 0.0
      %408 = vmatprep.subr.mxu0 0.0
      %409 = vmatpush2.msra.mxu0 0.0
      %410 = vmatprep.subr.mxu0 0.0
      %411 = vmatpush2.msra.mxu0 0.0
      %412 = vmatprep.subr.mxu0 0.0
      %413 = vmatpush2.msra.mxu0 0.0
      %414 = vmatprep.subr.mxu0 0.0
      %415 = vmatpush2.msra.mxu0 0.0
      %416 = vmatprep.subr.mxu0 0.0
      %417 = vmatpush2.msra.mxu0 0.0
      %418 = vmatprep.subr.mxu0 0.0
      %419 = vmatpush2.msra.mxu0 0.0
      %420 = vmatprep.mubr.f32.mxu0 0.0
      %421 = vmatmul.mubr.f32.gmra.mxu0 %v309
      %v422 = vpop.f32.mrf.mxu0
      %v423 = vadd.f32 %v305, %v422
      %v424 = vpop.f32.mrf.mxu0
      %425 = vmatprep.mubr.f32.mxu0 0.0
      %426 = vmatmul.mubr.f32.gmra.mxu0 %v312
      %v427 = vpop.f32.mrf.mxu0
      %v428 = vadd.f32 %v305, %v427
      %v429 = vpop.f32.mrf.mxu0
      %430 = vmatprep.mubr.f32.mxu0 0.0
      %431 = vmatmul.mubr.f32.gmra.mxu0 %v315
      %v432 = vpop.f32.mrf.mxu0
      %v433 = vadd.f32 %v305, %v432
      %v434 = vpop.f32.mrf.mxu0
      %435 = vmatprep.mubr.f32.mxu0 0.0
      %436 = vmatmul.mubr.f32.gmra.mxu0 %v318
      %v437 = vpop.f32.mrf.mxu0
      %v438 = vadd.f32 %v305, %v437
      %v439 = vpop.f32.mrf.mxu0
      %440 = vmatprep.mubr.f32.mxu0 0.0
      %441 = vmatmul.mubr.f32.gmra.mxu0 %v321
      %v442 = vpop.f32.mrf.mxu0
      %v443 = vadd.f32 %v305, %v442
      %v444 = vpop.f32.mrf.mxu0
      %445 = vmatprep.mubr.f32.mxu0 0.0
      %446 = vmatmul.mubr.f32.gmra.mxu0 %v324
      %v447 = vpop.f32.mrf.mxu0
      %v448 = vadd.f32 %v305, %v447
      %v449 = vpop.f32.mrf.mxu0
      %450 = vmatprep.mubr.f32.mxu0 0.0
      %451 = vmatmul.mubr.f32.gmra.mxu0 %v327
      %v452 = vpop.f32.mrf.mxu0
      %v453 = vadd.f32 %v305, %v452
      %v454 = vpop.f32.mrf.mxu0
      %455 = vmatprep.mubr.f32.mxu0 0.0
      %456 = vmatmul.mubr.f32.gmra.mxu0 %v330
      %v457 = vpop.f32.mrf.mxu0
      %v458 = vadd.f32 %v305, %v457
      %v459 = vpop.f32.mrf.mxu0
      %460 = vmatprep.mubr.f32.mxu0 0.0
      %461 = vmatmul.mubr.f32.gmra.mxu0 %v333
      %v462 = vpop.f32.mrf.mxu0
      %v463 = vadd.f32 %v305, %v462
      %v464 = vpop.f32.mrf.mxu0
      %465 = vmatprep.mubr.f32.mxu0 0.0
      %466 = vmatmul.mubr.f32.gmra.mxu0 %v336
      %v467 = vpop.f32.mrf.mxu0
      %v468 = vadd.f32 %v305, %v467
      %v469 = vpop.f32.mrf.mxu0
      %470 = vmatprep.mubr.f32.mxu0 0.0
      %471 = vmatmul.mubr.f32.gmra.mxu0 %v339
      %v472 = vpop.f32.mrf.mxu0
      %v473 = vadd.f32 %v305, %v472
      %v474 = vpop.f32.mrf.mxu0
      %475 = vmatprep.mubr.f32.mxu0 0.0
      %476 = vmatmul.mubr.f32.gmra.mxu0 %v342
      %v477 = vpop.f32.mrf.mxu0
      %v478 = vadd.f32 %v305, %v477
      %v479 = vpop.f32.mrf.mxu0
      %480 = vmatprep.mubr.f32.mxu0 0.0
      %481 = vmatmul.mubr.f32.gmra.mxu0 %v345
      %v482 = vpop.f32.mrf.mxu0
      %v483 = vadd.f32 %v305, %v482
      %v484 = vpop.f32.mrf.mxu0
      %485 = vmatprep.mubr.f32.mxu0 0.0
      %486 = vmatmul.mubr.f32.gmra.mxu0 %v348
      %v487 = vpop.f32.mrf.mxu0
      %v488 = vadd.f32 %v305, %v487
      %v489 = vpop.f32.mrf.mxu0
      %490 = vmatprep.mubr.f32.mxu0 0.0
      %491 = vmatmul.mubr.f32.gmra.mxu0 %v351
      %v492 = vpop.f32.mrf.mxu0
      %v493 = vadd.f32 %v305, %v492
      %v494 = vpop.f32.mrf.mxu0
      %495 = vmatprep.mubr.f32.mxu0 0.0
      %496 = vmatmul.mubr.f32.gmra.mxu0 %v354
      %v497 = vpop.f32.mrf.mxu0
      %v498 = vadd.f32 %v305, %v497
      %v499 = vpop.f32.mrf.mxu0
      %500 = vdwg.mxu0
      %vm501 = vcmp.gt.f32.partialorder %v423, 0.0
      %vm502 = vcmp.gt.f32.partialorder %v428, 0.0
      %vm503 = vcmp.gt.f32.partialorder %v433, 0.0
      %vm504 = vcmp.gt.f32.partialorder %v438, 0.0
      %vm505 = vcmp.gt.f32.partialorder %v443, 0.0
      %vm506 = vcmp.gt.f32.partialorder %v448, 0.0
      %vm507 = vcmp.gt.f32.partialorder %v453, 0.0
      %vm508 = vcmp.gt.f32.partialorder %v458, 0.0
      %vm509 = vcmp.gt.f32.partialorder %v463, 0.0
      %vm510 = vcmp.gt.f32.partialorder %v468, 0.0
      %vm511 = vcmp.gt.f32.partialorder %v473, 0.0
      %vm512 = vcmp.gt.f32.partialorder %v478, 0.0
      %vm513 = vcmp.gt.f32.partialorder %v483, 0.0
      %vm514 = vcmp.gt.f32.partialorder %v488, 0.0
      %vm515 = vcmp.gt.f32.partialorder %v493, 0.0
      %vm516 = vcmp.gt.f32.partialorder %v498, 0.0
      %v517 = vmul.f32 %v423, 0.1
      %v518 = vmul.f32 %v428, 0.1
      %v519 = vmul.f32 %v433, 0.1
      %v520 = vmul.f32 %v438, 0.1
      %v521 = vmul.f32 %v443, 0.1
      %v522 = vmul.f32 %v448, 0.1
      %v523 = vmul.f32 %v453, 0.1
      %v524 = vmul.f32 %v458, 0.1
      %v525 = vmul.f32 %v463, 0.1
      %v526 = vmul.f32 %v468, 0.1
      %v527 = vmul.f32 %v473, 0.1
      %v528 = vmul.f32 %v478, 0.1
      %v529 = vmul.f32 %v483, 0.1
      %v530 = vmul.f32 %v488, 0.1
      %v531 = vmul.f32 %v493, 0.1
      %v532 = vmul.f32 %v498, 0.1
      %v533 = vsel %vm501, %v423, %v517
      %v534 = vsel %vm502, %v428, %v518
      %v535 = vsel %vm503, %v433, %v519
      %v536 = vsel %vm504, %v438, %v520
      %v537 = vsel %vm505, %v443, %v521
      %v538 = vsel %vm506, %v448, %v522
      %v539 = vsel %vm507, %v453, %v523
      %v540 = vsel %vm508, %v458, %v524
      %v541 = vsel %vm509, %v463, %v525
      %v542 = vsel %vm510, %v468, %v526
      %v543 = vsel %vm511, %v473, %v527
      %v544 = vsel %vm512, %v478, %v528
      %v545 = vsel %vm513, %v483, %v529
      %v546 = vsel %vm514, %v488, %v530
      %v547 = vsel %vm515, %v493, %v531
      %v548 = vsel %vm516, %v498, %v532
      %v549 = vld [vmem:[%s3] sm:$0xff]
      %v550 = vld [vmem:[%s3 + $0x8] sm:$0xff]
      %v551 = vld [vmem:[%s3 + $0x10] sm:$0xff]
      %v552 = vld [vmem:[%s3 + $0x18] sm:$0xff]
      %v553 = vld [vmem:[%s4] sm:$0x1]
      %v555 = vlaneseq
      %v556 = vshrl.u32 %v555, 7
      %v557 = vsub.s32 0, %v556
      %v558 = vrot.slane %v553, %v557
      %vm560 = vcmask 261120
      %v562 = vsel %vm560, %v533, 0
      %v565 = vsel %vm560, %v534, 0
      %v568 = vsel %vm560, %v535, 0
      %v571 = vsel %vm560, %v536, 0
      %v574 = vsel %vm560, %v537, 0
      %v577 = vsel %vm560, %v538, 0
      %v580 = vsel %vm560, %v539, 0
      %v583 = vsel %vm560, %v540, 0
      %v586 = vsel %vm560, %v541, 0
      %v589 = vsel %vm560, %v542, 0
      %v592 = vsel %vm560, %v543, 0
      %v595 = vsel %vm560, %v544, 0
      %v598 = vsel %vm560, %v545, 0
      %v601 = vsel %vm560, %v546, 0
      %v604 = vsel %vm560, %v547, 0
      %v607 = vsel %vm560, %v548, 0
      %609 = vmatprep.subr.mxu0 0.0
      %610 = vmatpush1.msra.mxu0 0.0
      %611 = vmatprep.subr.mxu0 0.0
      %612 = vmatpush1.msra.mxu0 0.0
      %613 = vmatprep.subr.mxu0 0.0
      %614 = vmatpush1.msra.mxu0 0.0
      %615 = vmatprep.subr.mxu0 0.0
      %616 = vmatpush1.msra.mxu0 0.0
      %617 = vmatprep.subr.mxu0 0.0
      %618 = vmatpush1.msra.mxu0 0.0
      %619 = vmatprep.subr.mxu0 0.0
      %620 = vmatpush1.msra.mxu0 0.0
      %621 = vmatprep.subr.mxu0 0.0
      %622 = vmatpush1.msra.mxu0 0.0
      %623 = vmatprep.subr.mxu0 0.0
      %624 = vmatpush1.msra.mxu0 0.0
      %625 = vmatprep.subr.mxu0 0.0
      %626 = vmatpush1.msra.mxu0 0.0
      %627 = vmatprep.subr.mxu0 0.0
      %628 = vmatpush1.msra.mxu0 0.0
      %629 = vmatprep.subr.mxu0 0.0
      %630 = vmatpush1.msra.mxu0 0.0
      %631 = vmatprep.subr.mxu0 0.0
      %632 = vmatpush1.msra.mxu0 0.0
      %633 = vmatprep.subr.mxu0 0.0
      %634 = vmatpush1.msra.mxu0 %v552
      %635 = vmatprep.subr.mxu0 0.0
      %636 = vmatpush1.msra.mxu0 %v551
      %637 = vmatprep.subr.mxu0 0.0
      %638 = vmatpush1.msra.mxu0 %v550
      %639 = vmatprep.subr.mxu0 0.0
      %640 = vmatpush1.msra.mxu0 %v549
      %641 = vmatprep.subr.mxu0 0.0
      %642 = vmatpush2.msra.mxu0 0.0
      %643 = vmatprep.subr.mxu0 0.0
      %644 = vmatpush2.msra.mxu0 0.0
      %645 = vmatprep.subr.mxu0 0.0
      %646 = vmatpush2.msra.mxu0 0.0
      %647 = vmatprep.subr.mxu0 0.0
      %648 = vmatpush2.msra.mxu0 0.0
      %649 = vmatprep.subr.mxu0 0.0
      %650 = vmatpush2.msra.mxu0 0.0
      %651 = vmatprep.subr.mxu0 0.0
      %652 = vmatpush2.msra.mxu0 0.0
      %653 = vmatprep.subr.mxu0 0.0
      %654 = vmatpush2.msra.mxu0 0.0
      %655 = vmatprep.subr.mxu0 0.0
      %656 = vmatpush2.msra.mxu0 0.0
      %657 = vmatprep.subr.mxu0 0.0
      %658 = vmatpush2.msra.mxu0 0.0
      %659 = vmatprep.subr.mxu0 0.0
      %660 = vmatpush2.msra.mxu0 0.0
      %661 = vmatprep.subr.mxu0 0.0
      %662 = vmatpush2.msra.mxu0 0.0
      %663 = vmatprep.subr.mxu0 0.0
      %664 = vmatpush2.msra.mxu0 0.0
      %665 = vmatprep.subr.mxu0 0.0
      %666 = vmatpush2.msra.mxu0 0.0
      %667 = vmatprep.subr.mxu0 0.0
      %668 = vmatpush2.msra.mxu0 0.0
      %669 = vmatprep.subr.mxu0 0.0
      %670 = vmatpush2.msra.mxu0 0.0
      %671 = vmatprep.subr.mxu0 0.0
      %672 = vmatpush2.msra.mxu0 0.0
      %673 = vmatprep.mubr.f32.mxu0 0.0
      %674 = vmatmul.mubr.f32.gmra.mxu0 %v562
      %v675 = vpop.f32.mrf.mxu0
      %v676 = vadd.f32 %v558, %v675
      %v677 = vpop.f32.mrf.mxu0
      %678 = vmatprep.mubr.f32.mxu0 0.0
      %679 = vmatmul.mubr.f32.gmra.mxu0 %v565
      %v680 = vpop.f32.mrf.mxu0
      %v681 = vadd.f32 %v558, %v680
      %v682 = vpop.f32.mrf.mxu0
      %683 = vmatprep.mubr.f32.mxu0 0.0
      %684 = vmatmul.mubr.f32.gmra.mxu0 %v568
      %v685 = vpop.f32.mrf.mxu0
      %v686 = vadd.f32 %v558, %v685
      %v687 = vpop.f32.mrf.mxu0
      %688 = vmatprep.mubr.f32.mxu0 0.0
      %689 = vmatmul.mubr.f32.gmra.mxu0 %v571
      %v690 = vpop.f32.mrf.mxu0
      %v691 = vadd.f32 %v558, %v690
      %v692 = vpop.f32.mrf.mxu0
      %693 = vmatprep.mubr.f32.mxu0 0.0
      %694 = vmatmul.mubr.f32.gmra.mxu0 %v574
      %v695 = vpop.f32.mrf.mxu0
      %v696 = vadd.f32 %v558, %v695
      %v697 = vpop.f32.mrf.mxu0
      %698 = vmatprep.mubr.f32.mxu0 0.0
      %699 = vmatmul.mubr.f32.gmra.mxu0 %v577
      %v700 = vpop.f32.mrf.mxu0
      %v701 = vadd.f32 %v558, %v700
      %v702 = vpop.f32.mrf.mxu0
      %703 = vmatprep.mubr.f32.mxu0 0.0
      %704 = vmatmul.mubr.f32.gmra.mxu0 %v580
      %v705 = vpop.f32.mrf.mxu0
      %v706 = vadd.f32 %v558, %v705
      %v707 = vpop.f32.mrf.mxu0
      %708 = vmatprep.mubr.f32.mxu0 0.0
      %709 = vmatmul.mubr.f32.gmra.mxu0 %v583
      %v710 = vpop.f32.mrf.mxu0
      %v711 = vadd.f32 %v558, %v710
      %v712 = vpop.f32.mrf.mxu0
      %713 = vmatprep.mubr.f32.mxu0 0.0
      %714 = vmatmul.mubr.f32.gmra.mxu0 %v586
      %v715 = vpop.f32.mrf.mxu0
      %v716 = vadd.f32 %v558, %v715
      %v717 = vpop.f32.mrf.mxu0
      %718 = vmatprep.mubr.f32.mxu0 0.0
      %719 = vmatmul.mubr.f32.gmra.mxu0 %v589
      %v720 = vpop.f32.mrf.mxu0
      %v721 = vadd.f32 %v558, %v720
      %v722 = vpop.f32.mrf.mxu0
      %723 = vmatprep.mubr.f32.mxu0 0.0
      %724 = vmatmul.mubr.f32.gmra.mxu0 %v592
      %v725 = vpop.f32.mrf.mxu0
      %v726 = vadd.f32 %v558, %v725
      %v727 = vpop.f32.mrf.mxu0
      %728 = vmatprep.mubr.f32.mxu0 0.0
      %729 = vmatmul.mubr.f32.gmra.mxu0 %v595
      %v730 = vpop.f32.mrf.mxu0
      %v731 = vadd.f32 %v558, %v730
      %v732 = vpop.f32.mrf.mxu0
      %733 = vmatprep.mubr.f32.mxu0 0.0
      %734 = vmatmul.mubr.f32.gmra.mxu0 %v598
      %v735 = vpop.f32.mrf.mxu0
      %v736 = vadd.f32 %v558, %v735
      %v737 = vpop.f32.mrf.mxu0
      %738 = vmatprep.mubr.f32.mxu0 0.0
      %739 = vmatmul.mubr.f32.gmra.mxu0 %v601
      %v740 = vpop.f32.mrf.mxu0
      %v741 = vadd.f32 %v558, %v740
      %v742 = vpop.f32.mrf.mxu0
      %743 = vmatprep.mubr.f32.mxu0 0.0
      %744 = vmatmul.mubr.f32.gmra.mxu0 %v604
      %v745 = vpop.f32.mrf.mxu0
      %v746 = vadd.f32 %v558, %v745
      %v747 = vpop.f32.mrf.mxu0
      %748 = vmatprep.mubr.f32.mxu0 0.0
      %749 = vmatmul.mubr.f32.gmra.mxu0 %v607
      %v750 = vpop.f32.mrf.mxu0
      %v751 = vadd.f32 %v558, %v750
      %v752 = vpop.f32.mrf.mxu0
      %753 = vdwg.mxu0
      %vm754 = vcmp.gt.f32.partialorder %v676, 0.0
      %vm755 = vcmp.gt.f32.partialorder %v681, 0.0
      %vm756 = vcmp.gt.f32.partialorder %v686, 0.0
      %vm757 = vcmp.gt.f32.partialorder %v691, 0.0
      %vm758 = vcmp.gt.f32.partialorder %v696, 0.0
      %vm759 = vcmp.gt.f32.partialorder %v701, 0.0
      %vm760 = vcmp.gt.f32.partialorder %v706, 0.0
      %vm761 = vcmp.gt.f32.partialorder %v711, 0.0
      %vm762 = vcmp.gt.f32.partialorder %v716, 0.0
      %vm763 = vcmp.gt.f32.partialorder %v721, 0.0
      %vm764 = vcmp.gt.f32.partialorder %v726, 0.0
      %vm765 = vcmp.gt.f32.partialorder %v731, 0.0
      %vm766 = vcmp.gt.f32.partialorder %v736, 0.0
      %vm767 = vcmp.gt.f32.partialorder %v741, 0.0
      %vm768 = vcmp.gt.f32.partialorder %v746, 0.0
      %vm769 = vcmp.gt.f32.partialorder %v751, 0.0
      %v770 = vmul.f32 %v676, 0.1
      %v771 = vmul.f32 %v681, 0.1
      %v772 = vmul.f32 %v686, 0.1
      %v773 = vmul.f32 %v691, 0.1
      %v774 = vmul.f32 %v696, 0.1
      %v775 = vmul.f32 %v701, 0.1
      %v776 = vmul.f32 %v706, 0.1
      %v777 = vmul.f32 %v711, 0.1
      %v778 = vmul.f32 %v716, 0.1
      %v779 = vmul.f32 %v721, 0.1
      %v780 = vmul.f32 %v726, 0.1
      %v781 = vmul.f32 %v731, 0.1
      %v782 = vmul.f32 %v736, 0.1
      %v783 = vmul.f32 %v741, 0.1
      %v784 = vmul.f32 %v746, 0.1
      %v785 = vmul.f32 %v751, 0.1
      %v786 = vsel %vm754, %v676, %v770
      %v787 = vsel %vm755, %v681, %v771
      %v788 = vsel %vm756, %v686, %v772
      %v789 = vsel %vm757, %v691, %v773
      %v790 = vsel %vm758, %v696, %v774
      %v791 = vsel %vm759, %v701, %v775
      %v792 = vsel %vm760, %v706, %v776
      %v793 = vsel %vm761, %v711, %v777
      %v794 = vsel %vm762, %v716, %v778
      %v795 = vsel %vm763, %v721, %v779
      %v796 = vsel %vm764, %v726, %v780
      %v797 = vsel %vm765, %v731, %v781
      %v798 = vsel %vm766, %v736, %v782
      %v799 = vsel %vm767, %v741, %v783
      %v800 = vsel %vm768, %v746, %v784
      %v801 = vsel %vm769, %v751, %v785
      %v802 = vld [vmem:[%s5] sm:$0xff]
      %v803 = vld [vmem:[%s5 + $0x8] sm:$0xff]
      %v804 = vld [vmem:[%s5 + $0x10] sm:$0xff]
      %v805 = vld [vmem:[%s5 + $0x18] sm:$0xff]
      %v806 = vld [vmem:[%s6] sm:$0x1]
      %v808 = vlaneseq
      %v809 = vshrl.u32 %v808, 7
      %v810 = vsub.s32 0, %v809
      %v811 = vrot.slane %v806, %v810
      %v814 = vsel %vm560, %v786, 0
      %v817 = vsel %vm560, %v787, 0
      %v820 = vsel %vm560, %v788, 0
      %v823 = vsel %vm560, %v789, 0
      %v826 = vsel %vm560, %v790, 0
      %v829 = vsel %vm560, %v791, 0
      %v832 = vsel %vm560, %v792, 0
      %v835 = vsel %vm560, %v793, 0
      %v838 = vsel %vm560, %v794, 0
      %v841 = vsel %vm560, %v795, 0
      %v844 = vsel %vm560, %v796, 0
      %v847 = vsel %vm560, %v797, 0
      %v850 = vsel %vm560, %v798, 0
      %v853 = vsel %vm560, %v799, 0
      %v856 = vsel %vm560, %v800, 0
      %v859 = vsel %vm560, %v801, 0
      %861 = vmatprep.subr.mxu0 0.0
      %862 = vmatpush1.msra.mxu0 0.0
      %863 = vmatprep.subr.mxu0 0.0
      %864 = vmatpush1.msra.mxu0 0.0
      %865 = vmatprep.subr.mxu0 0.0
      %866 = vmatpush1.msra.mxu0 0.0
      %867 = vmatprep.subr.mxu0 0.0
      %868 = vmatpush1.msra.mxu0 0.0
      %869 = vmatprep.subr.mxu0 0.0
      %870 = vmatpush1.msra.mxu0 0.0
      %871 = vmatprep.subr.mxu0 0.0
      %872 = vmatpush1.msra.mxu0 0.0
      %873 = vmatprep.subr.mxu0 0.0
      %874 = vmatpush1.msra.mxu0 0.0
      %875 = vmatprep.subr.mxu0 0.0
      %876 = vmatpush1.msra.mxu0 0.0
      %877 = vmatprep.subr.mxu0 0.0
      %878 = vmatpush1.msra.mxu0 0.0
      %879 = vmatprep.subr.mxu0 0.0
      %880 = vmatpush1.msra.mxu0 0.0
      %881 = vmatprep.subr.mxu0 0.0
      %882 = vmatpush1.msra.mxu0 0.0
      %883 = vmatprep.subr.mxu0 0.0
      %884 = vmatpush1.msra.mxu0 0.0
      %885 = vmatprep.subr.mxu0 0.0
      %886 = vmatpush1.msra.mxu0 %v805
      %887 = vmatprep.subr.mxu0 0.0
      %888 = vmatpush1.msra.mxu0 %v804
      %889 = vmatprep.subr.mxu0 0.0
      %890 = vmatpush1.msra.mxu0 %v803
      %891 = vmatprep.subr.mxu0 0.0
      %892 = vmatpush1.msra.mxu0 %v802
      %893 = vmatprep.subr.mxu0 0.0
      %894 = vmatpush2.msra.mxu0 0.0
      %895 = vmatprep.subr.mxu0 0.0
      %896 = vmatpush2.msra.mxu0 0.0
      %897 = vmatprep.subr.mxu0 0.0
      %898 = vmatpush2.msra.mxu0 0.0
      %899 = vmatprep.subr.mxu0 0.0
      %900 = vmatpush2.msra.mxu0 0.0
      %901 = vmatprep.subr.mxu0 0.0
      %902 = vmatpush2.msra.mxu0 0.0
      %903 = vmatprep.subr.mxu0 0.0
      %904 = vmatpush2.msra.mxu0 0.0
      %905 = vmatprep.subr.mxu0 0.0
      %906 = vmatpush2.msra.mxu0 0.0
      %907 = vmatprep.subr.mxu0 0.0
      %908 = vmatpush2.msra.mxu0 0.0
      %909 = vmatprep.subr.mxu0 0.0
      %910 = vmatpush2.msra.mxu0 0.0
      %911 = vmatprep.subr.mxu0 0.0
      %912 = vmatpush2.msra.mxu0 0.0
      %913 = vmatprep.subr.mxu0 0.0
      %914 = vmatpush2.msra.mxu0 0.0
      %915 = vmatprep.subr.mxu0 0.0
      %916 = vmatpush2.msra.mxu0 0.0
      %917 = vmatprep.subr.mxu0 0.0
      %918 = vmatpush2.msra.mxu0 0.0
      %919 = vmatprep.subr.mxu0 0.0
      %920 = vmatpush2.msra.mxu0 0.0
      %921 = vmatprep.subr.mxu0 0.0
      %922 = vmatpush2.msra.mxu0 0.0
      %923 = vmatprep.subr.mxu0 0.0
      %924 = vmatpush2.msra.mxu0 0.0
      %925 = vmatprep.mubr.f32.mxu0 0.0
      %926 = vmatmul.mubr.f32.gmra.mxu0 %v814
      %v927 = vpop.f32.mrf.mxu0
      %v928 = vadd.f32 %v811, %v927
      %v929 = vpop.f32.mrf.mxu0
      %930 = vmatprep.mubr.f32.mxu0 0.0
      %931 = vmatmul.mubr.f32.gmra.mxu0 %v817
      %v932 = vpop.f32.mrf.mxu0
      %v933 = vadd.f32 %v811, %v932
      %v934 = vpop.f32.mrf.mxu0
      %935 = vmatprep.mubr.f32.mxu0 0.0
      %936 = vmatmul.mubr.f32.gmra.mxu0 %v820
      %v937 = vpop.f32.mrf.mxu0
      %v938 = vadd.f32 %v811, %v937
      %v939 = vpop.f32.mrf.mxu0
      %940 = vmatprep.mubr.f32.mxu0 0.0
      %941 = vmatmul.mubr.f32.gmra.mxu0 %v823
      %v942 = vpop.f32.mrf.mxu0
      %v943 = vadd.f32 %v811, %v942
      %v944 = vpop.f32.mrf.mxu0
      %945 = vmatprep.mubr.f32.mxu0 0.0
      %946 = vmatmul.mubr.f32.gmra.mxu0 %v826
      %v947 = vpop.f32.mrf.mxu0
      %v948 = vadd.f32 %v811, %v947
      %v949 = vpop.f32.mrf.mxu0
      %950 = vmatprep.mubr.f32.mxu0 0.0
      %951 = vmatmul.mubr.f32.gmra.mxu0 %v829
      %v952 = vpop.f32.mrf.mxu0
      %v953 = vadd.f32 %v811, %v952
      %v954 = vpop.f32.mrf.mxu0
      %955 = vmatprep.mubr.f32.mxu0 0.0
      %956 = vmatmul.mubr.f32.gmra.mxu0 %v832
      %v957 = vpop.f32.mrf.mxu0
      %v958 = vadd.f32 %v811, %v957
      %v959 = vpop.f32.mrf.mxu0
      %960 = vmatprep.mubr.f32.mxu0 0.0
      %961 = vmatmul.mubr.f32.gmra.mxu0 %v835
      %v962 = vpop.f32.mrf.mxu0
      %v963 = vadd.f32 %v811, %v962
      %v964 = vpop.f32.mrf.mxu0
      %965 = vmatprep.mubr.f32.mxu0 0.0
      %966 = vmatmul.mubr.f32.gmra.mxu0 %v838
      %v967 = vpop.f32.mrf.mxu0
      %v968 = vadd.f32 %v811, %v967
      %v969 = vpop.f32.mrf.mxu0
      %970 = vmatprep.mubr.f32.mxu0 0.0
      %971 = vmatmul.mubr.f32.gmra.mxu0 %v841
      %v972 = vpop.f32.mrf.mxu0
      %v973 = vadd.f32 %v811, %v972
      %v974 = vpop.f32.mrf.mxu0
      %975 = vmatprep.mubr.f32.mxu0 0.0
      %976 = vmatmul.mubr.f32.gmra.mxu0 %v844
      %v977 = vpop.f32.mrf.mxu0
      %v978 = vadd.f32 %v811, %v977
      %v979 = vpop.f32.mrf.mxu0
      %980 = vmatprep.mubr.f32.mxu0 0.0
      %981 = vmatmul.mubr.f32.gmra.mxu0 %v847
      %v982 = vpop.f32.mrf.mxu0
      %v983 = vadd.f32 %v811, %v982
      %v984 = vpop.f32.mrf.mxu0
      %985 = vmatprep.mubr.f32.mxu0 0.0
      %986 = vmatmul.mubr.f32.gmra.mxu0 %v850
      %v987 = vpop.f32.mrf.mxu0
      %v988 = vadd.f32 %v811, %v987
      %v989 = vpop.f32.mrf.mxu0
      %990 = vmatprep.mubr.f32.mxu0 0.0
      %991 = vmatmul.mubr.f32.gmra.mxu0 %v853
      %v992 = vpop.f32.mrf.mxu0
      %v993 = vadd.f32 %v811, %v992
      %v994 = vpop.f32.mrf.mxu0
      %995 = vmatprep.mubr.f32.mxu0 0.0
      %996 = vmatmul.mubr.f32.gmra.mxu0 %v856
      %v997 = vpop.f32.mrf.mxu0
      %v998 = vadd.f32 %v811, %v997
      %v999 = vpop.f32.mrf.mxu0
      %1000 = vmatprep.mubr.f32.mxu0 0.0
      %1001 = vmatmul.mubr.f32.gmra.mxu0 %v859
      %v1002 = vpop.f32.mrf.mxu0
      %v1003 = vadd.f32 %v811, %v1002
      %v1004 = vpop.f32.mrf.mxu0
      %1005 = vdwg.mxu0
      %vm1006 = vcmask 64512
      %1007 = vst.msk [vmem:[%s280] sm:$0xff] %vm1006, %v928
      %1008 = vst.msk [vmem:[%s280 + $0x8] sm:$0xff] %vm1006, %v933
      %1009 = vst.msk [vmem:[%s280 + $0x10] sm:$0xff] %vm1006, %v938
      %1010 = vst.msk [vmem:[%s280 + $0x18] sm:$0xff] %vm1006, %v943
      %1011 = vst.msk [vmem:[%s280 + $0x20] sm:$0xff] %vm1006, %v948
      %1012 = vst.msk [vmem:[%s280 + $0x28] sm:$0xff] %vm1006, %v953
      %1013 = vst.msk [vmem:[%s280 + $0x30] sm:$0xff] %vm1006, %v958
      %1014 = vst.msk [vmem:[%s280 + $0x38] sm:$0xff] %vm1006, %v963
      %1015 = vst.msk [vmem:[%s280 + $0x40] sm:$0xff] %vm1006, %v968
      %1016 = vst.msk [vmem:[%s280 + $0x48] sm:$0xff] %vm1006, %v973
      %1017 = vst.msk [vmem:[%s280 + $0x50] sm:$0xff] %vm1006, %v978
      %1018 = vst.msk [vmem:[%s280 + $0x58] sm:$0xff] %vm1006, %v983
      %1019 = vst.msk [vmem:[%s280 + $0x60] sm:$0xff] %vm1006, %v988
      %1020 = vst.msk [vmem:[%s280 + $0x68] sm:$0xff] %vm1006, %v993
      %1021 = vst.msk [vmem:[%s280 + $0x70] sm:$0xff] %vm1006, %v998
      %1022 = vst.msk [vmem:[%s280 + $0x78] sm:$0xff] %vm1006, %v1003
      %s1023 = smul.u32 16, %s18
      %p1024 = scmp.lt.s32.totalorder %s1023, 31
      %s1025 = scalar_select %p1024, %s1023, 31
      %s1026 = smul.addr %s1025, 8
      %s1027 = scalar_lea.vmem %s7, %s1026
      // Predicated region
      $region49: #{tpu_custom_call.1} parent=47 // pred_check
        %p1028 = pneg %p188
      $region50: #{tpu_custom_call.1} parent=47 // pred_check_branch
        %1030 = sbr.rel (%p1028) target = $region52
      $region51: #{tpu_custom_call.1} parent=47 // pred_region
        %s1031 = smul.u32 16, %s18
      $region52: #{tpu_custom_call.1} parent=47 // pred_fallthru
        _
    $region48: #{tpu_custom_call.1} parent=5 // pred_fallthru
      _
    %p1032 = scmp.le.s32.totalorder 2, %s13
    // Predicated region
    $region53: #{tpu_custom_call.1} parent=5 // pred_check
      %p1033 = pneg %p1032
    $region54: #{tpu_custom_call.1} parent=5 // pred_check_branch
      %1035 = sbr.rel (%p1033) target = $region56
    $region55: #{tpu_custom_call.1} parent=5 // pred_region
      %s1036 = ssub.s32 %s13, 2
      // Predicated region
      $region57: #{tpu_custom_call.1} parent=55 // pred_check
        %p1037 = pneg %p194
      $region58: #{tpu_custom_call.1} parent=55 // pred_check_branch
        %1039 = sbr.rel (%p1037) target = $region60
      $region59: #{tpu_custom_call.1} parent=55 // pred_region
        %s1040 = smul.u32 16, %s19
        %p1041 = scmp.lt.s32.totalorder %s1040, 31
        %s1042 = scalar_select %p1041, %s1040, 31
        %s1043 = smul.addr %s1042, 8
        %s1044 = scalar_lea.vmem %s7, %s1043
      $region60: #{tpu_custom_call.1} parent=55 // pred_fallthru
        _
    $region56: #{tpu_custom_call.1} parent=5 // pred_fallthru
      _
  $region6: #{tpu_custom_call.1} parent=0 // loop_footer
    %s17 = sadd.s32 1, %s13
  $region7: #{tpu_custom_call.1} parent=0 // loop_footer_branch
    %12 = sbr.rel target = $region3
  $region8: #{tpu_custom_call.1} parent=0 // loop_exit
    _

</llo_original>
